<compile_context>
chip_gen: v5e
topology: v5e:2x2
jax: 0.10.0
libtpu: 0.0.40
codegen_flags: <defaults>
</compile_context>

<pallas_src>
import jax
import jax.numpy as jnp
from jax.experimental import pallas as pl
from jax.experimental.pallas import tpu as pltpu

IN_DIM = 28 * 28          # 784
NUM_CLASSES = 10
PADDED_CLASSES = 128      # lane-dense output width
DEFAULT_TB = 1024         # safe on v5e's 16 MiB default scoped VMEM


def _round_up(n, m):
    return ((n + m - 1) // m) * m


def _classifier_kernel(x_ref, w_ref, b_ref, logits_ref, preds_ref):
    # (TB, 784) bf16 @ (784, 128) bf16 -> (TB, 128), f32 accumulate on the MXU.
    h = jnp.dot(x_ref[...], w_ref[...], preferred_element_type=jnp.float32)
    h = h + b_ref[...]                      # bias broadcast over batch: (1, 128) f32
    h = jnp.maximum(h, 0.0)                 # relu

    # Mask padded class columns to -inf so they can't affect max / lse / argmax.
    col = jax.lax.broadcasted_iota(jnp.int32, h.shape, 1)
    h = jnp.where(col < NUM_CLASSES, h, -jnp.inf)

    # Numerically-stable log_softmax along the class dim.
    m = jnp.max(h, axis=1, keepdims=True)            # finite (real cols >= 0 after relu)
    shifted = h - m
    lse = jnp.log(jnp.sum(jnp.exp(shifted), axis=1, keepdims=True))
    logits_ref[...] = (shifted - lse).astype(logits_ref.dtype)

    # Argmax: max(shifted) == 0 by construction, so the argmax column is the
    # first lane where shifted == 0 (first-occurrence ties, like torch.argmax).
    cand = jnp.where(shifted == 0.0, col, jnp.int32(PADDED_CLASSES))
    preds_ref[...] = jnp.min(cand, axis=1, keepdims=True).astype(jnp.int32)


def simplest_classifier_forward(x, weight_t, bias, *, tb=None):
    """x: (B, 1, 28, 28) float32 (NCHW).  weight_t: (784, 10).  bias: (10,)."""
    b = x.shape[0]
    x_flat = x.reshape(b, -1)                         # (B, 784), same as torch .view
    in_dim = x_flat.shape[1]

    # Batch tile: multiple of 8 (sublane), capped at DEFAULT_TB; pad B up to it.
    if tb is None:
        tb = min(DEFAULT_TB, _round_up(b, 8))
    b_pad = _round_up(b, tb)
    if b_pad != b:
        x_flat = jnp.pad(x_flat, ((0, b_pad - b), (0, 0)))

    # bf16 for the bandwidth-bound input stream + MXU-native matmul.
    x_bf16 = x_flat.astype(jnp.bfloat16)

    # Zero-pad the class dim to 128 for lane-dense output stores.
    w_pad = jnp.zeros((in_dim, PADDED_CLASSES), jnp.bfloat16)
    w_pad = w_pad.at[:, :NUM_CLASSES].set(weight_t.astype(jnp.bfloat16))
    b_pad2d = jnp.zeros((1, PADDED_CLASSES), jnp.float32)
    b_pad2d = b_pad2d.at[:, :NUM_CLASSES].set(bias.astype(jnp.float32))

    grid = (b_pad // tb,)
    logits_full, preds2d = pl.pallas_call(
        _classifier_kernel,
        grid=grid,
        in_specs=[
            pl.BlockSpec((tb, in_dim), lambda i: (i, 0)),               # x: streamed
            pl.BlockSpec((in_dim, PADDED_CLASSES), lambda i: (0, 0)),   # weight: resident
            pl.BlockSpec((1, PADDED_CLASSES), lambda i: (0, 0)),        # bias: resident
        ],
        out_specs=[
            pl.BlockSpec((tb, PADDED_CLASSES), lambda i: (i, 0)),       # lane-dense logits
            pl.BlockSpec((tb, 1), lambda i: (i, 0)),
        ],
        out_shape=[
            jax.ShapeDtypeStruct((b_pad, PADDED_CLASSES), jnp.float32),
            jax.ShapeDtypeStruct((b_pad, 1), jnp.int32),
        ],
        compiler_params=pltpu.CompilerParams(
            dimension_semantics=("parallel",)),
    )(x_bf16, w_pad, b_pad2d)

    logits = logits_full[:b, :NUM_CLASSES]
    preds = preds2d[:b, 0]
    return {"logits": logits, "preds": preds}


def init_params(key, in_dim=IN_DIM, num_classes=NUM_CLASSES):
    """Deterministic init matching torch.nn.Linear default (U[-1/sqrt(in), 1/sqrt(in)])."""
    kw, kb = jax.random.split(key)
    bound = 1.0 / jnp.sqrt(jnp.float32(in_dim))
    # Stored already transposed: (in_dim, num_classes).
    weight_t = jax.random.uniform(kw, (in_dim, num_classes), jnp.float32, -bound, bound)
    bias = jax.random.uniform(kb, (num_classes,), jnp.float32, -bound, bound)
    return weight_t, bias


if __name__ == "__main__":
    key = jax.random.PRNGKey(0)
    k_x, k_p = jax.random.split(key)

    batch = 2
    x = jax.random.normal(k_x, (batch, 1, 28, 28), jnp.float32)  # NCHW, MNIST-shaped
    weight_t, bias = init_params(k_p)

    out = simplest_classifier_forward(x, weight_t, bias)
    jax.block_until_ready(out)

    # Sanity check against plain-JAX f32 reference (bf16 input path -> loose tol).
    xf = x.reshape(batch, -1)
    h = jnp.maximum(xf @ weight_t + bias, 0.0)
    ref_logits = jax.nn.log_softmax(h, axis=1)
    ref_preds = jnp.argmax(ref_logits, axis=1)
    assert out["logits"].shape == (batch, NUM_CLASSES)
    assert out["preds"].shape == (batch,)
    assert jnp.allclose(out["logits"], ref_logits, atol=2e-2, rtol=2e-2)
    assert jnp.all(out["preds"] == ref_preds)

    print("KERNEL_OK")
</pallas_src>

<mosaic_0001>
module attributes {stable_mosaic.version = 11 : i64} {
  func.func @_classifier_kernel(%arg0: i32, %arg1: memref<8x784xbf16, #tpu.memory_space<vmem>>, %arg2: memref<784x128xbf16, #tpu.memory_space<vmem>>, %arg3: memref<1x128xf32, #tpu.memory_space<vmem>>, %arg4: memref<8x128xf32, #tpu.memory_space<vmem>>, %arg5: memref<8x1xi32, #tpu.memory_space<vmem>>) attributes {dimension_semantics = [#tpu.dimension_semantics<parallel>], iteration_bounds = array<i64: 1>, scalar_prefetch = 0 : i64, scratch_operands = 0 : i64, tpu.core_type = #tpu.core_type<tc>, window_params = [{transform_indices = @transform_0, window_bounds = array<i64: 8, 784>}, {pipeline_mode = #tpu.pipeline_mode<synchronous>, transform_indices = @transform_1, window_bounds = array<i64: 784, 128>}, {pipeline_mode = #tpu.pipeline_mode<synchronous>, transform_indices = @transform_2, window_bounds = array<i64: 1, 128>}, {transform_indices = @transform_3, window_bounds = array<i64: 8, 128>}, {transform_indices = @transform_4, window_bounds = array<i64: 8, 1>}]} {
    %c0 = arith.constant 0 : index
    %c0_0 = arith.constant 0 : index
    %0 = vector.load %arg1[%c0, %c0_0] : memref<8x784xbf16, #tpu.memory_space<vmem>>, vector<8x784xbf16>
    %c0_1 = arith.constant 0 : index
    %c0_2 = arith.constant 0 : index
    %1 = vector.load %arg2[%c0_1, %c0_2] : memref<784x128xbf16, #tpu.memory_space<vmem>>, vector<784x128xbf16>
    %cst = arith.constant dense<0.000000e+00> : vector<8x128xf32>
    %2 = tpu.matmul %0, %1, %cst {dimension_numbers = #tpu.dot_dimension_numbers<[1], [0], [0], [1], [0, 0, 1, 1], [], []>} : vector<8x784xbf16>, vector<784x128xbf16>, vector<8x128xf32> -> vector<8x128xf32>
    %c0_3 = arith.constant 0 : index
    %c0_4 = arith.constant 0 : index
    %3 = vector.load %arg3[%c0_3, %c0_4] : memref<1x128xf32, #tpu.memory_space<vmem>>, vector<1x128xf32>
    %4 = vector.broadcast %3 : vector<1x128xf32> to vector<8x128xf32>
    %5 = arith.addf %2, %4 : vector<8x128xf32>
    %cst_5 = arith.constant 0.000000e+00 : f32
    %6 = vector.broadcast %cst_5 : f32 to vector<8x128xf32>
    %7 = arith.maximumf %5, %6 : vector<8x128xf32>
    %8 = tpu.iota {dimensions = array<i32: 1>} : vector<8x128xi32>
    %c10_i32 = arith.constant 10 : i32
    %9 = vector.broadcast %c10_i32 : i32 to vector<8x128xi32>
    %10 = arith.cmpi slt, %8, %9 : vector<8x128xi32>
    %cst_6 = arith.constant 0xFF800000 : f32
    %11 = vector.broadcast %cst_6 : f32 to vector<8x128xf32>
    %12 = arith.select %10, %7, %11 : vector<8x128xi1>, vector<8x128xf32>
    %cst_7 = arith.constant dense<0xFF800000> : vector<8xf32>
    %13 = vector.multi_reduction <maximumf>, %12, %cst_7 [1] : vector<8x128xf32> to vector<8xf32>
    %14 = vector.shape_cast %13 : vector<8xf32> to vector<8x1xf32>
    %15 = vector.broadcast %14 : vector<8x1xf32> to vector<8x128xf32>
    %16 = arith.subf %12, %15 : vector<8x128xf32>
    %17 = math.exp %16 : vector<8x128xf32>
    %cst_8 = arith.constant dense<0.000000e+00> : vector<8xf32>
    %18 = vector.multi_reduction <add>, %17, %cst_8 [1] : vector<8x128xf32> to vector<8xf32>
    %19 = vector.shape_cast %18 : vector<8xf32> to vector<8x1xf32>
    %20 = math.log %19 : vector<8x1xf32>
    %21 = vector.broadcast %20 : vector<8x1xf32> to vector<8x128xf32>
    %22 = arith.subf %16, %21 : vector<8x128xf32>
    %c0_9 = arith.constant 0 : index
    %c0_10 = arith.constant 0 : index
    %23 = vector.load %arg4[%c0_9, %c0_10] : memref<8x128xf32, #tpu.memory_space<vmem>>, vector<8x128xf32>
    tpu.vector_store %arg4[%c0_9, %c0_10], %22 {strides = array<i32>} : memref<8x128xf32, #tpu.memory_space<vmem>>, vector<8x128xf32>,
    %cst_11 = arith.constant 0.000000e+00 : f32
    %24 = vector.broadcast %cst_11 : f32 to vector<8x128xf32>
    %25 = arith.cmpf oeq, %16, %24 : vector<8x128xf32>
    %c128_i32 = arith.constant 128 : i32
    %26 = vector.broadcast %c128_i32 : i32 to vector<8x128xi32>
    %27 = arith.select %25, %8, %26 : vector<8x128xi1>, vector<8x128xi32>
    %cst_12 = arith.constant dense<2147483647> : vector<8xi32>
    %28 = vector.multi_reduction <minsi>, %27, %cst_12 [1] : vector<8x128xi32> to vector<8xi32>
    %29 = vector.shape_cast %28 : vector<8xi32> to vector<8x1xi32>
    %c0_13 = arith.constant 0 : index
    %c0_14 = arith.constant 0 : index
    %30 = vector.load %arg5[%c0_13, %c0_14] : memref<8x1xi32, #tpu.memory_space<vmem>>, vector<8x1xi32>
    tpu.vector_store %arg5[%c0_13, %c0_14], %29 {strides = array<i32>} : memref<8x1xi32, #tpu.memory_space<vmem>>, vector<8x1xi32>,
    return
  }
  func.func @transform_0(%arg0: i32) -> (i32, i32) {
    %c0_i32 = arith.constant 0 : i32
    %c0_i32_0 = arith.constant 0 : i32
    return %arg0, %c0_i32 : i32, i32
  }
  func.func @transform_1(%arg0: i32) -> (i32, i32) {
    %c0_i32 = arith.constant 0 : i32
    %c0_i32_0 = arith.constant 0 : i32
    %c0_i32_1 = arith.constant 0 : i32
    return %c0_i32, %c0_i32_0 : i32, i32
  }
  func.func @transform_2(%arg0: i32) -> (i32, i32) {
    %c0_i32 = arith.constant 0 : i32
    %c0_i32_0 = arith.constant 0 : i32
    %c0_i32_1 = arith.constant 0 : i32
    return %c0_i32, %c0_i32_0 : i32, i32
  }
  func.func @transform_3(%arg0: i32) -> (i32, i32) {
    %c0_i32 = arith.constant 0 : i32
    %c0_i32_0 = arith.constant 0 : i32
    return %arg0, %c0_i32 : i32, i32
  }
  func.func @transform_4(%arg0: i32) -> (i32, i32) {
    %c0_i32 = arith.constant 0 : i32
    %c0_i32_0 = arith.constant 0 : i32
    return %arg0, %c0_i32 : i32, i32
  }
}

</mosaic_0001>

<llo_original>
// kernel: tpu_custom_call.1
$region0: #{tpu_custom_call.1}
  #allocation0 [shape = 'u32[]', space=smem, size = 0x4, offset = 0x4, fixed_abs, tag = 'smem constant byte address 0x4 - core index']
  #allocation1 [shape = 'u32[72,128]{1,0:T(1,128)}', space=vmem, size = 0x9000, scoped, tag = 'internal scratch']
  %s0 = inlined_call_operand.hbm [shape: bf16[8,784], index: 0, kind: input, shape index: {}]
  %s1 = inlined_call_operand.hbm [shape: bf16[784,128], index: 1, kind: input, shape index: {}]
  %s2 = inlined_call_operand.vmem [shape: f32[1,128], index: 2, kind: input, shape index: {}]
  %s3 = inlined_call_operand.hbm [shape: f32[8,128], index: 3, kind: output, shape index: {0}]
  %s4 = inlined_call_operand.vmem [shape: s32[8,1], index: 4, kind: output, shape index: {1}]
  %5 = xla_tuple %s3, %s4
  %s6 = sld [smem:[#allocation0]]
  $region38: #{tpu_custom_call.1} parent=0
    _
  %s8 = ssub.s32 1, %s6
  %s9 = scalar_select 0, %s8, %s6
  $region1: #{tpu_custom_call.1} parent=0
    #allocation2 [shape = 'u8[14336]{0}', space=vmem, size = 0x3800, scoped, tag = 'input window, operand 0, single buffered']
    #allocation3 [shape = 's32[1]{0}', space=sflag, size = 0x4, scoped, tag = 'scoped memory for tpu_custom_call.1']
    #allocation4 [shape = 's32[1]{0}', space=sflag, size = 0x4, scoped, tag = 'scoped memory for tpu_custom_call.1']
    #allocation5 [shape = 'u8[200704]{0}', space=vmem, size = 0x31000, scoped, tag = 'input window, operand 1, single buffered']
    #allocation6 [shape = 's32[1]{0}', space=sflag, size = 0x4, scoped, tag = 'scoped memory for tpu_custom_call.1']
    #allocation7 [shape = 'u8[4096]{0}', space=vmem, size = 0x1000, scoped, tag = 'output window, operand 0, single buffered']
    %10 = vsyncpa [#allocation3], 0
    %11 = vsyncpa [#allocation6], 0
    %12 = vsyncpa [#allocation4], 0
    // Predicated region
    $region2: #{tpu_custom_call.1} parent=1 // pred_check
      _
    $region3: #{tpu_custom_call.1} parent=1 // pred_check_branch
      %14 = sbr.rel (0) target = $region5
    $region4: #{tpu_custom_call.1} parent=1 // pred_region
      %16 = vsyncadd [#allocation3], 0
      %s18 = sshll.u32 %s0, 4
      %s19 = int_to_ptr.hbm [resolvable:$true] %s18
      %s20 = sshll.u32 [#allocation2], 4
      %s21 = int_to_ptr.vmem [resolvable:$true] %s20
      %23 = dma.hbm_to_vmem [thread:$0]  %s19, 448, %s21, [#allocation3]
    $region5: #{tpu_custom_call.1} parent=1 // pred_fallthru
      _
    // Predicated region
    $region6: #{tpu_custom_call.1} parent=1 // pred_check
      _
    $region7: #{tpu_custom_call.1} parent=1 // pred_check_branch
      %25 = sbr.rel (0) target = $region9
    $region8: #{tpu_custom_call.1} parent=1 // pred_region
      %27 = vsyncadd [#allocation6], 0
      %s28 = sshll.u32 %s1, 4
      %s29 = int_to_ptr.hbm [resolvable:$true] %s28
      %s30 = sshll.u32 [#allocation5], 4
      %s31 = int_to_ptr.vmem [resolvable:$true] %s30
      %36 = dma.hbm_to_vmem [thread:$0]  %s29, 6272, %s31, [#allocation6], 64, 64, 4
    $region9: #{tpu_custom_call.1} parent=1 // pred_fallthru
      _
    // Predicated region
    $region10: #{tpu_custom_call.1} parent=1 // pred_check
      _
    $region11: #{tpu_custom_call.1} parent=1 // pred_check_branch
      %38 = sbr.rel (0) target = $region13
    $region12: #{tpu_custom_call.1} parent=1 // pred_region
      _
    $region13: #{tpu_custom_call.1} parent=1 // pred_fallthru
      _
    // Predicated region
    $region14: #{tpu_custom_call.1} parent=1 // pred_check
      _
    $region15: #{tpu_custom_call.1} parent=1 // pred_check_branch
      %40 = sbr.rel (0) target = $region17
    $region16: #{tpu_custom_call.1} parent=1 // pred_region
      %42 = dma.done [#allocation3], 448
    $region17: #{tpu_custom_call.1} parent=1 // pred_fallthru
      _
    // Predicated region
    $region18: #{tpu_custom_call.1} parent=1 // pred_check
      _
    $region19: #{tpu_custom_call.1} parent=1 // pred_check_branch
      %44 = sbr.rel (0) target = $region21
    $region20: #{tpu_custom_call.1} parent=1 // pred_region
      %46 = dma.done [#allocation6], 6272
    $region21: #{tpu_custom_call.1} parent=1 // pred_fallthru
      _
    %v48 = vld [vmem:[#allocation2] sm:$0xff]
    %v49 = vld [vmem:[#allocation2 + $0x8] sm:$0xff]
    %v50 = vld [vmem:[#allocation2 + $0x10] sm:$0xff]
    %v51 = vld [vmem:[#allocation2 + $0x18] sm:$0xf]
    %v52 = vld [vmem:[#allocation5] sm:$0xf]
    %v53 = vld [vmem:[#allocation5 + $0x4] sm:$0xf]
    %v54 = vld [vmem:[#allocation5 + $0x8] sm:$0xf]
    %v55 = vld [vmem:[#allocation5 + $0xc] sm:$0xf]
    %v56 = vld [vmem:[#allocation5 + $0x10] sm:$0xf]
    %v57 = vld [vmem:[#allocation5 + $0x14] sm:$0xf]
    %v58 = vld [vmem:[#allocation5 + $0x18] sm:$0xf]
    %v59 = vld [vmem:[#allocation5 + $0x1c] sm:$0xf]
    %v60 = vld [vmem:[#allocation5 + $0x20] sm:$0xf]
    %v61 = vld [vmem:[#allocation5 + $0x24] sm:$0xf]
    %v62 = vld [vmem:[#allocation5 + $0x28] sm:$0xf]
    %v63 = vld [vmem:[#allocation5 + $0x2c] sm:$0xf]
    %v64 = vld [vmem:[#allocation5 + $0x30] sm:$0xf]
    %v65 = vld [vmem:[#allocation5 + $0x34] sm:$0xf]
    %v66 = vld [vmem:[#allocation5 + $0x38] sm:$0xf]
    %v67 = vld [vmem:[#allocation5 + $0x3c] sm:$0xf]
    %v68 = vld [vmem:[#allocation5 + $0x40] sm:$0xf]
    %v69 = vld [vmem:[#allocation5 + $0x44] sm:$0xf]
    %v70 = vld [vmem:[#allocation5 + $0x48] sm:$0xf]
    %v71 = vld [vmem:[#allocation5 + $0x4c] sm:$0xf]
    %v72 = vld [vmem:[#allocation5 + $0x50] sm:$0xf]
    %v73 = vld [vmem:[#allocation5 + $0x54] sm:$0xf]
    %v74 = vld [vmem:[#allocation5 + $0x58] sm:$0xf]
    %v75 = vld [vmem:[#allocation5 + $0x5c] sm:$0xf]
    %v76 = vld [vmem:[#allocation5 + $0x60] sm:$0xf]
    %v77 = vld [vmem:[#allocation5 + $0x64] sm:$0xf]
    %v78 = vld [vmem:[#allocation5 + $0x68] sm:$0xf]
    %v79 = vld [vmem:[#allocation5 + $0x6c] sm:$0xf]
    %v80 = vld [vmem:[#allocation5 + $0x70] sm:$0xf]
    %v81 = vld [vmem:[#allocation5 + $0x74] sm:$0xf]
    %v82 = vld [vmem:[#allocation5 + $0x78] sm:$0xf]
    %v83 = vld [vmem:[#allocation5 + $0x7c] sm:$0xf]
    %v84 = vld [vmem:[#allocation5 + $0x80] sm:$0xf]
    %v85 = vld [vmem:[#allocation5 + $0x84] sm:$0xf]
    %v86 = vld [vmem:[#allocation5 + $0x88] sm:$0xf]
    %v87 = vld [vmem:[#allocation5 + $0x8c] sm:$0xf]
    %v88 = vld [vmem:[#allocation5 + $0x90] sm:$0xf]
    %v89 = vld [vmem:[#allocation5 + $0x94] sm:$0xf]
    %v90 = vld [vmem:[#allocation5 + $0x98] sm:$0xf]
    %v91 = vld [vmem:[#allocation5 + $0x9c] sm:$0xf]
    %v92 = vld [vmem:[#allocation5 + $0xa0] sm:$0xf]
    %v93 = vld [vmem:[#allocation5 + $0xa4] sm:$0xf]
    %v94 = vld [vmem:[#allocation5 + $0xa8] sm:$0xf]
    %v95 = vld [vmem:[#allocation5 + $0xac] sm:$0xf]
    %v96 = vld [vmem:[#allocation5 + $0xb0] sm:$0xf]
    %v97 = vld [vmem:[#allocation5 + $0xb4] sm:$0xf]
    %v98 = vld [vmem:[#allocation5 + $0xb8] sm:$0xf]
    %v99 = vld [vmem:[#allocation5 + $0xbc] sm:$0xf]
    %v100 = vld [vmem:[#allocation5 + $0xc0] sm:$0xf]
    %v101 = vld [vmem:[#allocation5 + $0xc4] sm:$0xf]
    %v102 = vld [vmem:[#allocation5 + $0xc8] sm:$0xf]
    %v103 = vld [vmem:[#allocation5 + $0xcc] sm:$0xf]
    %v104 = vld [vmem:[#allocation5 + $0xd0] sm:$0xf]
    %v105 = vld [vmem:[#allocation5 + $0xd4] sm:$0xf]
    %v106 = vld [vmem:[#allocation5 + $0xd8] sm:$0xf]
    %v107 = vld [vmem:[#allocation5 + $0xdc] sm:$0xf]
    %v108 = vld [vmem:[#allocation5 + $0xe0] sm:$0xf]
    %v109 = vld [vmem:[#allocation5 + $0xe4] sm:$0xf]
    %v110 = vld [vmem:[#allocation5 + $0xe8] sm:$0xf]
    %v111 = vld [vmem:[#allocation5 + $0xec] sm:$0xf]
    %v112 = vld [vmem:[#allocation5 + $0xf0] sm:$0xf]
    %v113 = vld [vmem:[#allocation5 + $0xf4] sm:$0xf]
    %v114 = vld [vmem:[#allocation5 + $0xf8] sm:$0xf]
    %v115 = vld [vmem:[#allocation5 + $0xfc] sm:$0xf]
    %v116 = vld [vmem:[#allocation5 + $0x100] sm:$0xf]
    %v117 = vld [vmem:[#allocation5 + $0x104] sm:$0xf]
    %v118 = vld [vmem:[#allocation5 + $0x108] sm:$0xf]
    %v119 = vld [vmem:[#allocation5 + $0x10c] sm:$0xf]
    %v120 = vld [vmem:[#allocation5 + $0x110] sm:$0xf]
    %v121 = vld [vmem:[#allocation5 + $0x114] sm:$0xf]
    %v122 = vld [vmem:[#allocation5 + $0x118] sm:$0xf]
    %v123 = vld [vmem:[#allocation5 + $0x11c] sm:$0xf]
    %v124 = vld [vmem:[#allocation5 + $0x120] sm:$0xf]
    %v125 = vld [vmem:[#allocation5 + $0x124] sm:$0xf]
    %v126 = vld [vmem:[#allocation5 + $0x128] sm:$0xf]
    %v127 = vld [vmem:[#allocation5 + $0x12c] sm:$0xf]
    %v128 = vld [vmem:[#allocation5 + $0x130] sm:$0xf]
    %v129 = vld [vmem:[#allocation5 + $0x134] sm:$0xf]
    %v130 = vld [vmem:[#allocation5 + $0x138] sm:$0xf]
    %v131 = vld [vmem:[#allocation5 + $0x13c] sm:$0xf]
    %v132 = vld [vmem:[#allocation5 + $0x140] sm:$0xf]
    %v133 = vld [vmem:[#allocation5 + $0x144] sm:$0xf]
    %v134 = vld [vmem:[#allocation5 + $0x148] sm:$0xf]
    %v135 = vld [vmem:[#allocation5 + $0x14c] sm:$0xf]
    %v136 = vld [vmem:[#allocation5 + $0x150] sm:$0xf]
    %v137 = vld [vmem:[#allocation5 + $0x154] sm:$0xf]
    %v138 = vld [vmem:[#allocation5 + $0x158] sm:$0xf]
    %v139 = vld [vmem:[#allocation5 + $0x15c] sm:$0xf]
    %v140 = vld [vmem:[#allocation5 + $0x160] sm:$0xf]
    %v141 = vld [vmem:[#allocation5 + $0x164] sm:$0xf]
    %v142 = vld [vmem:[#allocation5 + $0x168] sm:$0xf]
    %v143 = vld [vmem:[#allocation5 + $0x16c] sm:$0xf]
    %v144 = vld [vmem:[#allocation5 + $0x170] sm:$0xf]
    %v145 = vld [vmem:[#allocation5 + $0x174] sm:$0xf]
    %v146 = vld [vmem:[#allocation5 + $0x178] sm:$0xf]
    %v147 = vld [vmem:[#allocation5 + $0x17c] sm:$0xf]
    %v148 = vld [vmem:[#allocation5 + $0x180] sm:$0xf]
    %v149 = vld [vmem:[#allocation5 + $0x184] sm:$0xf]
    %v150 = vld [vmem:[%s2] sm:$0x1]
    %v152 = vperm.slane %v150, 0
    %v158 = vunpack.c.l.b16 %v48
    %v159 = vunpack.c.h.b16 %v48
    %v160 = vunpack.c.l.b16 %v49
    %v161 = vunpack.c.h.b16 %v49
    %v162 = vunpack.c.l.b16 %v50
    %v163 = vunpack.c.h.b16 %v50
    %v164 = vunpack.c.l.b16 %v51
    %v165 = vpack.c.b16 %v158, %v158
    %v166 = vpack.c.b16 %v159, %v159
    %v167 = vpack.c.b16 %v160, %v160
    %v168 = vpack.c.b16 %v161, %v161
    %v169 = vpack.c.b16 %v162, %v162
    %v170 = vpack.c.b16 %v163, %v163
    %v171 = vpack.c.b16 %v164, %v164
    %v276 = vunpack.c.l.b16 %v52
    %v277 = vunpack.c.l.b16 %v53
    %v278 = vunpack.c.l.b16 %v54
    %v279 = vunpack.c.l.b16 %v55
    %v280 = vunpack.c.l.b16 %v56
    %v281 = vunpack.c.l.b16 %v57
    %v282 = vunpack.c.l.b16 %v58
    %v283 = vunpack.c.l.b16 %v59
    %v284 = vunpack.c.l.b16 %v60
    %v285 = vunpack.c.l.b16 %v61
    %v286 = vunpack.c.l.b16 %v62
    %v287 = vunpack.c.l.b16 %v63
    %v288 = vunpack.c.l.b16 %v64
    %v289 = vunpack.c.l.b16 %v65
    %v290 = vunpack.c.l.b16 %v66
    %v291 = vunpack.c.l.b16 %v67
    %v292 = vunpack.c.l.b16 %v68
    %v293 = vunpack.c.l.b16 %v69
    %v294 = vunpack.c.l.b16 %v70
    %v295 = vunpack.c.l.b16 %v71
    %v296 = vunpack.c.l.b16 %v72
    %v297 = vunpack.c.l.b16 %v73
    %v298 = vunpack.c.l.b16 %v74
    %v299 = vunpack.c.l.b16 %v75
    %v300 = vunpack.c.l.b16 %v76
    %v301 = vunpack.c.l.b16 %v77
    %v302 = vunpack.c.l.b16 %v78
    %v303 = vunpack.c.l.b16 %v79
    %v304 = vunpack.c.l.b16 %v80
    %v305 = vunpack.c.l.b16 %v81
    %v306 = vunpack.c.l.b16 %v82
    %v307 = vunpack.c.l.b16 %v83
    %v308 = vunpack.c.l.b16 %v84
    %v309 = vunpack.c.l.b16 %v85
    %v310 = vunpack.c.l.b16 %v86
    %v311 = vunpack.c.l.b16 %v87
    %v312 = vunpack.c.l.b16 %v88
    %v313 = vunpack.c.l.b16 %v89
    %v314 = vunpack.c.l.b16 %v90
    %v315 = vunpack.c.l.b16 %v91
    %v316 = vunpack.c.l.b16 %v92
    %v317 = vunpack.c.l.b16 %v93
    %v318 = vunpack.c.l.b16 %v94
    %v319 = vunpack.c.l.b16 %v95
    %v320 = vunpack.c.l.b16 %v96
    %v321 = vunpack.c.l.b16 %v97
    %v322 = vunpack.c.l.b16 %v98
    %v323 = vunpack.c.l.b16 %v99
    %v324 = vunpack.c.l.b16 %v100
    %v325 = vunpack.c.l.b16 %v101
    %v326 = vunpack.c.l.b16 %v102
    %v327 = vunpack.c.l.b16 %v103
    %v328 = vunpack.c.l.b16 %v104
    %v329 = vunpack.c.l.b16 %v105
    %v330 = vunpack.c.l.b16 %v106
    %v331 = vunpack.c.l.b16 %v107
    %v332 = vunpack.c.l.b16 %v108
    %v333 = vunpack.c.l.b16 %v109
    %v334 = vunpack.c.l.b16 %v110
    %v335 = vunpack.c.l.b16 %v111
    %v336 = vunpack.c.l.b16 %v112
    %v337 = vunpack.c.l.b16 %v113
    %v338 = vunpack.c.l.b16 %v114
    %v339 = vunpack.c.l.b16 %v115
    %v340 = vunpack.c.l.b16 %v116
    %v341 = vunpack.c.l.b16 %v117
    %v342 = vunpack.c.l.b16 %v118
    %v343 = vunpack.c.l.b16 %v119
    %v344 = vunpack.c.l.b16 %v120
    %v345 = vunpack.c.l.b16 %v121
    %v346 = vunpack.c.l.b16 %v122
    %v347 = vunpack.c.l.b16 %v123
    %v348 = vunpack.c.l.b16 %v124
    %v349 = vunpack.c.l.b16 %v125
    %v350 = vunpack.c.l.b16 %v126
    %v351 = vunpack.c.l.b16 %v127
    %v352 = vunpack.c.l.b16 %v128
    %v353 = vunpack.c.l.b16 %v129
    %v354 = vunpack.c.l.b16 %v130
    %v355 = vunpack.c.l.b16 %v131
    %v356 = vunpack.c.l.b16 %v132
    %v357 = vunpack.c.l.b16 %v133
    %v358 = vunpack.c.l.b16 %v134
    %v359 = vunpack.c.l.b16 %v135
    %v360 = vunpack.c.l.b16 %v136
    %v361 = vunpack.c.l.b16 %v137
    %v362 = vunpack.c.l.b16 %v138
    %v363 = vunpack.c.l.b16 %v139
    %v364 = vunpack.c.l.b16 %v140
    %v365 = vunpack.c.l.b16 %v141
    %v366 = vunpack.c.l.b16 %v142
    %v367 = vunpack.c.l.b16 %v143
    %v368 = vunpack.c.l.b16 %v144
    %v369 = vunpack.c.l.b16 %v145
    %v370 = vunpack.c.l.b16 %v146
    %v371 = vunpack.c.l.b16 %v147
    %v372 = vunpack.c.l.b16 %v148
    %v373 = vunpack.c.l.b16 %v149
    %v374 = vpack.c.b16 %v277, %v276
    %v375 = vpack.c.b16 %v279, %v278
    %v376 = vpack.c.b16 %v281, %v280
    %v377 = vpack.c.b16 %v283, %v282
    %v378 = vpack.c.b16 %v285, %v284
    %v379 = vpack.c.b16 %v287, %v286
    %v380 = vpack.c.b16 %v289, %v288
    %v381 = vpack.c.b16 %v291, %v290
    %v382 = vpack.c.b16 %v293, %v292
    %v383 = vpack.c.b16 %v295, %v294
    %v384 = vpack.c.b16 %v297, %v296
    %v385 = vpack.c.b16 %v299, %v298
    %v386 = vpack.c.b16 %v301, %v300
    %v387 = vpack.c.b16 %v303, %v302
    %v388 = vpack.c.b16 %v305, %v304
    %v389 = vpack.c.b16 %v307, %v306
    %v390 = vpack.c.b16 %v309, %v308
    %v391 = vpack.c.b16 %v311, %v310
    %v392 = vpack.c.b16 %v313, %v312
    %v393 = vpack.c.b16 %v315, %v314
    %v394 = vpack.c.b16 %v317, %v316
    %v395 = vpack.c.b16 %v319, %v318
    %v396 = vpack.c.b16 %v321, %v320
    %v397 = vpack.c.b16 %v323, %v322
    %v398 = vpack.c.b16 %v325, %v324
    %v399 = vpack.c.b16 %v327, %v326
    %v400 = vpack.c.b16 %v329, %v328
    %v401 = vpack.c.b16 %v331, %v330
    %v402 = vpack.c.b16 %v333, %v332
    %v403 = vpack.c.b16 %v335, %v334
    %v404 = vpack.c.b16 %v337, %v336
    %v405 = vpack.c.b16 %v339, %v338
    %v406 = vpack.c.b16 %v341, %v340
    %v407 = vpack.c.b16 %v343, %v342
    %v408 = vpack.c.b16 %v345, %v344
    %v409 = vpack.c.b16 %v347, %v346
    %v410 = vpack.c.b16 %v349, %v348
    %v411 = vpack.c.b16 %v351, %v350
    %v412 = vpack.c.b16 %v353, %v352
    %v413 = vpack.c.b16 %v355, %v354
    %v414 = vpack.c.b16 %v357, %v356
    %v415 = vpack.c.b16 %v359, %v358
    %v416 = vpack.c.b16 %v361, %v360
    %v417 = vpack.c.b16 %v363, %v362
    %v418 = vpack.c.b16 %v365, %v364
    %v419 = vpack.c.b16 %v367, %v366
    %v420 = vpack.c.b16 %v369, %v368
    %v421 = vpack.c.b16 %v371, %v370
    %v422 = vpack.c.b16 %v373, %v372
    %vm472 = vcmask 130048
    %v474 = vsel %vm472, %v171, 0
    %476 = vmatpush.bf16.msra.mxu0 %v381
    %477 = vmatpush.bf16.msra.mxu0 %v380
    %478 = vmatpush.bf16.msra.mxu0 %v379
    %479 = vmatpush.bf16.msra.mxu0 %v378
    %480 = vmatpush.bf16.msra.mxu0 %v377
    %481 = vmatpush.bf16.msra.mxu0 %v376
    %482 = vmatpush.bf16.msra.mxu0 %v375
    %483 = vmatpush.bf16.msra.mxu0 %v374
    %484 = vmatmul.bf16.gmra.mxu0 %v165
    %v485 = vpop.f32.mrf.mxu0
    %v486 = vadd.f32 %v152, %v485
    %v487 = vpop.f32.mrf.mxu0
    %488 = vdwg.mxu0
    %489 = vmatpush.bf16.msra.mxu0 %v389
    %490 = vmatpush.bf16.msra.mxu0 %v388
    %491 = vmatpush.bf16.msra.mxu0 %v387
    %492 = vmatpush.bf16.msra.mxu0 %v386
    %493 = vmatpush.bf16.msra.mxu0 %v385
    %494 = vmatpush.bf16.msra.mxu0 %v384
    %495 = vmatpush.bf16.msra.mxu0 %v383
    %496 = vmatpush.bf16.msra.mxu0 %v382
    %497 = vmatmul.bf16.gmra.mxu0 %v166
    %v498 = vpop.f32.mrf.mxu0
    %v499 = vadd.f32 %v486, %v498
    %v500 = vpop.f32.mrf.mxu0
    %501 = vdwg.mxu0
    %502 = vmatpush.bf16.msra.mxu0 %v397
    %503 = vmatpush.bf16.msra.mxu0 %v396
    %504 = vmatpush.bf16.msra.mxu0 %v395
    %505 = vmatpush.bf16.msra.mxu0 %v394
    %506 = vmatpush.bf16.msra.mxu0 %v393
    %507 = vmatpush.bf16.msra.mxu0 %v392
    %508 = vmatpush.bf16.msra.mxu0 %v391
    %509 = vmatpush.bf16.msra.mxu0 %v390
    %510 = vmatmul.bf16.gmra.mxu0 %v167
    %v511 = vpop.f32.mrf.mxu0
    %v512 = vadd.f32 %v499, %v511
    %v513 = vpop.f32.mrf.mxu0
    %514 = vdwg.mxu0
    %515 = vmatpush.bf16.msra.mxu0 %v405
    %516 = vmatpush.bf16.msra.mxu0 %v404
    %517 = vmatpush.bf16.msra.mxu0 %v403
    %518 = vmatpush.bf16.msra.mxu0 %v402
    %519 = vmatpush.bf16.msra.mxu0 %v401
    %520 = vmatpush.bf16.msra.mxu0 %v400
    %521 = vmatpush.bf16.msra.mxu0 %v399
    %522 = vmatpush.bf16.msra.mxu0 %v398
    %523 = vmatmul.bf16.gmra.mxu0 %v168
    %v524 = vpop.f32.mrf.mxu0
    %v525 = vadd.f32 %v512, %v524
    %v526 = vpop.f32.mrf.mxu0
    %527 = vdwg.mxu0
    %528 = vmatpush.bf16.msra.mxu0 %v413
    %529 = vmatpush.bf16.msra.mxu0 %v412
    %530 = vmatpush.bf16.msra.mxu0 %v411
    %531 = vmatpush.bf16.msra.mxu0 %v410
    %532 = vmatpush.bf16.msra.mxu0 %v409
    %533 = vmatpush.bf16.msra.mxu0 %v408
    %534 = vmatpush.bf16.msra.mxu0 %v407
    %535 = vmatpush.bf16.msra.mxu0 %v406
    %536 = vmatmul.bf16.gmra.mxu0 %v169
    %v537 = vpop.f32.mrf.mxu0
    %v538 = vadd.f32 %v525, %v537
    %v539 = vpop.f32.mrf.mxu0
    %540 = vdwg.mxu0
    %541 = vmatpush.bf16.msra.mxu0 %v421
    %542 = vmatpush.bf16.msra.mxu0 %v420
    %543 = vmatpush.bf16.msra.mxu0 %v419
    %544 = vmatpush.bf16.msra.mxu0 %v418
    %545 = vmatpush.bf16.msra.mxu0 %v417
    %546 = vmatpush.bf16.msra.mxu0 %v416
    %547 = vmatpush.bf16.msra.mxu0 %v415
    %548 = vmatpush.bf16.msra.mxu0 %v414
    %549 = vmatmul.bf16.gmra.mxu0 %v170
    %v550 = vpop.f32.mrf.mxu0
    %v551 = vadd.f32 %v538, %v550
    %v552 = vpop.f32.mrf.mxu0
    %553 = vdwg.mxu0
    %554 = vmatpush.bf16.msra.mxu0 0
    %555 = vmatpush.bf16.msra.mxu0 0
    %556 = vmatpush.bf16.msra.mxu0 0
    %557 = vmatpush.bf16.msra.mxu0 0
    %558 = vmatpush.bf16.msra.mxu0 0
    %559 = vmatpush.bf16.msra.mxu0 0
    %560 = vmatpush.bf16.msra.mxu0 0
    %561 = vmatpush.bf16.msra.mxu0 %v422
    %562 = vmatmul.bf16.gmra.mxu0 %v474
    %v563 = vpop.f32.mrf.mxu0
    %v564 = vadd.f32 %v551, %v563
    %v565 = vpop.f32.mrf.mxu0
    %566 = vdwg.mxu0
    %v567 = vmax.f32 %v564, 0.0
    %v568 = vlaneseq
    %v569 = vand.u32 %v568, 127
    %vm570 = vcmp.lt.s32.totalorder %v569, 10
    %v571 = vsel %vm570, %v567, -inf
    %572 = vmax.xlane.f32.xlu0 %v571
    %v573 = vpop.xlane.xlu0 %572
    %v574 = vsub.f32 %v571, %v573
    %v575 = vmul.f32 %v574, 1.442695
    %v576 = vpow.pop %v575
    %577 = vadd.xlane.f32.xlu0 %v576
    %v578 = vpop.xlane.xlu0 %577
    %v579 = vlog2.pop %v578
    %v580 = vmul.f32 %v579, 0.6931472
    %v581 = vsub.f32 %v574, %v580
    %582 = vst [vmem:[#allocation7] sm:$0xff] %v581
    %vm583 = vcmp.eq.f32.partialorder %v574, 0.0
    %v584 = vsel %vm583, %v569, 128
    %v585 = vand.u32 %v584, 65535
    %v586 = vshra.s32 %v584, 16
    %v587 = vcvt.s32.f32 %v585
    %v588 = vcvt.s32.f32 %v586
    %589 = vmin.xlane.f32.xlu0 %v588
    %v590 = vpop.xlane.xlu0 %589
    %vm591 = vcmp.eq.f32.partialorder %v588, %v590
    %v592 = vsel %vm591, %v587, inf
    %593 = vmin.xlane.f32.xlu0 %v592
    %v594 = vpop.xlane.xlu0 %593
    %v595 = vcvt.f32.s32 %v594
    %v596 = vcvt.f32.s32 %v590
    %v597 = vshll.u32 %v596, 16
    %v598 = vadd.s32 %v597, %v595
    %vm599 = vcmask 7168
    %600 = vst.msk [vmem:[%s4] sm:$0xff] %vm599, %v598
    // Predicated region
    $region22: #{tpu_custom_call.1} parent=1 // pred_check
      _
    $region23: #{tpu_custom_call.1} parent=1 // pred_check_branch
      %602 = sbr.rel (0) target = $region25
    $region24: #{tpu_custom_call.1} parent=1 // pred_region
      %604 = vsyncadd [#allocation4], 0
      %s606 = sshll.u32 [#allocation7], 4
      %s607 = int_to_ptr.vmem [resolvable:$true] %s606
      %s608 = sshll.u32 %s3, 4
      %s609 = int_to_ptr.hbm [resolvable:$true] %s608
      %611 = dma.vmem_to_hbm [thread:$0]  %s607, 128, %s609, [#allocation4]
    $region25: #{tpu_custom_call.1} parent=1 // pred_fallthru
      _
    // Predicated region
    $region26: #{tpu_custom_call.1} parent=1 // pred_check
      _
    $region27: #{tpu_custom_call.1} parent=1 // pred_check_branch
      %613 = sbr.rel (0) target = $region29
    $region28: #{tpu_custom_call.1} parent=1 // pred_region
      _
    $region29: #{tpu_custom_call.1} parent=1 // pred_fallthru
      _
    // Predicated region
    $region30: #{tpu_custom_call.1} parent=1 // pred_check
      _
    $region31: #{tpu_custom_call.1} parent=1 // pred_check_branch
      %615 = sbr.rel (0) target = $region33
    $region32: #{tpu_custom_call.1} parent=1 // pred_region
      %617 = dma.done [#allocation4], 128
    $region33: #{tpu_custom_call.1} parent=1 // pred_fallthru
      _
    // Predicated region
    $region34: #{tpu_custom_call.1} parent=1 // pred_check
      _
    $region35: #{tpu_custom_call.1} parent=1 // pred_check_branch
      %619 = sbr.rel (0) target = $region37
    $region36: #{tpu_custom_call.1} parent=1 // pred_region
      _
    $region37: #{tpu_custom_call.1} parent=1 // pred_fallthru
      _
    %620 = vsyncpa [#allocation3], 1
    %621 = vsyncpa [#allocation6], 1
    %622 = vsyncpa [#allocation4], 1

</llo_original>
